<compile_context>
chip_gen: v7x
topology: tpu7x:2x2x1
jax: 0.10.0
libtpu: 0.0.40
codegen_flags: <defaults>
</compile_context>

<pallas_src>
import functools

import jax
import jax.numpy as jnp
from jax.experimental import pallas as pl
from jax.experimental.pallas import tpu as pltpu


# -----------------------------------------------------------------------------
# Fused single-pass kernel: one batch slab per grid step.
# -----------------------------------------------------------------------------
def se_fused_kernel(x_ref, w1t_ref, w2t_ref, o_ref):
    # x_ref  : (1, C, HW)  input slab (native dtype)
    # w1t_ref: (C, C//r)   fc1 weight, pre-transposed in the wrapper
    # w2t_ref: (C//r, C)   fc2 weight, pre-transposed in the wrapper
    # o_ref  : (1, C, HW)
    x = x_ref[...]
    # Squeeze: global average pool over the spatial (lane) axis, f32 accumulate.
    pooled = jnp.mean(x, axis=-1, dtype=jnp.float32)                   # (1, C)
    # Excitation: fc1 -> relu -> fc2 -> sigmoid (tiny; f32).
    h = jnp.dot(pooled, w1t_ref[...].astype(jnp.float32),
                preferred_element_type=jnp.float32)                    # (1, C//r)
    h = jnp.maximum(h, 0.0)
    z = jnp.dot(h, w2t_ref[...].astype(jnp.float32),
                preferred_element_type=jnp.float32)                    # (1, C)
    s = jax.nn.sigmoid(z)                                              # (1, C)
    # Scale: broadcast channel weights over the spatial axis, in x's dtype.
    scale = s[:, :, None].astype(x.dtype)                              # (1, C, 1)
    o_ref[...] = (x * scale).astype(o_ref.dtype)


# -----------------------------------------------------------------------------
# Two-pass path, pass 1: pooled sums over HW tiles + excitation on finalize.
# -----------------------------------------------------------------------------
def se_pool_excite_kernel(x_ref, w1t_ref, w2t_ref, s_ref, acc_ref, *,
                          hw_total, mask_tail):
    # x_ref  : (1, C, T)    one spatial tile of one batch element
    # w1t_ref: (C, C//r)    resident
    # w2t_ref: (C//r, C)    resident
    # s_ref  : (1, C, 1)    output: sigmoid excitation per (batch, channel)
    # acc_ref: (1, C) f32   VMEM scratch: running channel sum
    t_idx = pl.program_id(1)

    @pl.when(t_idx == 0)
    def _():
        acc_ref[...] = jnp.zeros_like(acc_ref)

    x = x_ref[...]
    if mask_tail:
        tile = x.shape[-1]
        lane = jax.lax.broadcasted_iota(jnp.int32, x.shape, dimension=2)
        valid = (t_idx * tile + lane) < hw_total
        x = jnp.where(valid, x, jnp.zeros((), x.dtype))
    acc_ref[...] += jnp.sum(x, axis=-1, dtype=jnp.float32)

    @pl.when(t_idx == pl.num_programs(1) - 1)
    def _():
        pooled = acc_ref[...] * (1.0 / hw_total)                       # (1, C)
        h = jnp.dot(pooled, w1t_ref[...].astype(jnp.float32),
                    preferred_element_type=jnp.float32)                # (1, C//r)
        h = jnp.maximum(h, 0.0)
        z = jnp.dot(h, w2t_ref[...].astype(jnp.float32),
                    preferred_element_type=jnp.float32)                # (1, C)
        s_ref[...] = jax.nn.sigmoid(z)[:, :, None].astype(s_ref.dtype)


# -----------------------------------------------------------------------------
# Two-pass path, pass 2: elementwise scale with lane-dense output tiles.
# -----------------------------------------------------------------------------
def se_scale_kernel(s_ref, x_ref, o_ref):
    # s_ref: (1, C, 1) f32, x_ref/o_ref: (1, C, T)
    x = x_ref[...]
    scale = s_ref[...].astype(x.dtype)                                 # (1, C, 1)
    o_ref[...] = (x * scale).astype(o_ref.dtype)


# -----------------------------------------------------------------------------
# Wrapper
# -----------------------------------------------------------------------------
def _choose_hw_tile(hw, c, itemsize, target_bytes):
    """Lane-dense spatial tile: full HW if it fits the per-block budget,
    otherwise the largest multiple of 128 (>= 512) under the budget."""
    if hw * c * itemsize <= target_bytes:
        return hw
    t = (target_bytes // (c * itemsize)) // 128 * 128
    t = max(t, 512)
    return min(t, hw)


def se_block(x, w1, w2, *, max_block_bytes=4 << 20):
    """x: (B, C, H, W); w1: (C//r, C); w2: (C, C//r) (PyTorch Linear layout).
    Returns (B, C, H, W)."""
    b, c, h, w = x.shape
    hw = h * w
    x_flat = x.reshape(b, c, hw)
    itemsize = x.dtype.itemsize

    # Pre-transpose weights once so kernels never transpose inside the loop.
    w1t = jnp.asarray(w1).T          # (C, C//r)
    w2t = jnp.asarray(w2).T          # (C//r, C)
    cr = w1t.shape[1]

    # 4 MiB blocks keep in+out double-buffering well under the 32 MiB scoped
    # VMEM default on every generation (and under v7x's 64 MiB physical).
    if hw * c * itemsize <= max_block_bytes:
        # ---------------- fused path: grid over batch only ----------------
        out_flat = pl.pallas_call(
            se_fused_kernel,
            out_shape=jax.ShapeDtypeStruct((b, c, hw), x.dtype),
            grid_spec=pltpu.PrefetchScalarGridSpec(
                num_scalar_prefetch=0,
                grid=(b,),
                in_specs=[
                    pl.BlockSpec((1, c, hw), lambda i: (i, 0, 0)),
                    pl.BlockSpec((c, cr), lambda i: (0, 0)),   # resident
                    pl.BlockSpec((cr, c), lambda i: (0, 0)),   # resident
                ],
                out_specs=pl.BlockSpec((1, c, hw), lambda i: (i, 0, 0)),
            ),
            compiler_params=pltpu.CompilerParams(
                dimension_semantics=("parallel",)),
        )(x_flat, w1t, w2t)
        return out_flat.reshape(b, c, h, w)

    # ---------------- two-pass path: tile HW as well ----------------
    t = _choose_hw_tile(hw, c, itemsize, max_block_bytes)
    n_t = pl.cdiv(hw, t)

    # Pass 1: channel sums accumulated across HW tiles + excitation.
    s = pl.pallas_call(
        functools.partial(se_pool_excite_kernel, hw_total=hw,
                          mask_tail=(hw % t != 0)),
        out_shape=jax.ShapeDtypeStruct((b, c, 1), jnp.float32),
        grid_spec=pltpu.PrefetchScalarGridSpec(
            num_scalar_prefetch=0,
            grid=(b, n_t),
            in_specs=[
                pl.BlockSpec((1, c, t), lambda i, j: (i, 0, j)),
                pl.BlockSpec((c, cr), lambda i, j: (0, 0)),    # resident
                pl.BlockSpec((cr, c), lambda i, j: (0, 0)),    # resident
            ],
            out_specs=pl.BlockSpec((1, c, 1), lambda i, j: (i, 0, 0)),
            scratch_shapes=[pltpu.VMEM((1, c), jnp.float32)],
        ),
        compiler_params=pltpu.CompilerParams(
            dimension_semantics=("parallel", "arbitrary")),
    )(x_flat, w1t, w2t)

    # Pass 2: elementwise scale of x by the per-channel excitation.
    out_flat = pl.pallas_call(
        se_scale_kernel,
        out_shape=jax.ShapeDtypeStruct((b, c, hw), x.dtype),
        grid_spec=pltpu.PrefetchScalarGridSpec(
            num_scalar_prefetch=0,
            grid=(b, n_t),
            in_specs=[
                pl.BlockSpec((1, c, 1), lambda i, j: (i, 0, 0)),
                pl.BlockSpec((1, c, t), lambda i, j: (i, 0, j)),
            ],
            out_specs=pl.BlockSpec((1, c, t), lambda i, j: (i, 0, j)),
        ),
        compiler_params=pltpu.CompilerParams(
            dimension_semantics=("parallel", "parallel")),
    )(s, x_flat)

    return out_flat.reshape(b, c, h, w)


def se_block_ref(x, w1, w2):
    """Pure-JAX reference matching the PyTorch forward."""
    pooled = jnp.mean(x, axis=(2, 3))                        # (B, C)
    h = jnp.maximum(pooled @ w1.T, 0.0)                      # (B, C//r)
    s = jax.nn.sigmoid(h @ w2.T)                             # (B, C)
    return s[:, :, None, None] * x


if __name__ == "__main__":
    key = jax.random.PRNGKey(0)
    kx, k1, k2 = jax.random.split(key, 3)

    B, C, H, W = 2, 8, 16, 16
    ratio = 4
    hidden = C // ratio

    x = jax.random.normal(kx, (B, C, H, W), dtype=jnp.float32)
    # Deterministic synthetic weights (PyTorch Linear layout: (out, in)).
    w1 = jax.random.normal(k1, (hidden, C), dtype=jnp.float32) * 0.1
    w2 = jax.random.normal(k2, (C, hidden), dtype=jnp.float32) * 0.1

    # Fused (grid over batch) path.
    out = jax.block_until_ready(se_block(x, w1, w2))
    ref = se_block_ref(x, w1, w2)
    assert out.shape == (B, C, H, W)
    assert jnp.allclose(out, ref, atol=1e-5, rtol=1e-5), "fused path mismatch"

    # Force the tiled two-pass path (incl. a ragged masked spatial tile) by
    # shrinking the per-block VMEM budget.
    x2 = jax.random.normal(kx, (B, C, 30, 30), dtype=jnp.float32)
    out2 = jax.block_until_ready(se_block(x2, w1, w2, max_block_bytes=4096))
    ref2 = se_block_ref(x2, w1, w2)
    assert out2.shape == x2.shape
    assert jnp.allclose(out2, ref2, atol=1e-5, rtol=1e-5), "tiled path mismatch"

    print("KERNEL_OK")
</pallas_src>

<mosaic_0001>
module attributes {stable_mosaic.version = 11 : i64} {
  func.func @se_fused_kernel(%arg0: i32, %arg1: memref<1x8x256xf32, #tpu.memory_space<vmem>>, %arg2: memref<8x2xf32, #tpu.memory_space<vmem>>, %arg3: memref<2x8xf32, #tpu.memory_space<vmem>>, %arg4: memref<1x8x256xf32, #tpu.memory_space<vmem>>) attributes {dimension_semantics = [#tpu.dimension_semantics<parallel>], iteration_bounds = array<i64: 2>, scalar_prefetch = 0 : i64, scratch_operands = 0 : i64, tpu.core_type = #tpu.core_type<tc>, window_params = [{transform_indices = @transform_0, window_bounds = array<i64: 1, 8, 256>}, {pipeline_mode = #tpu.pipeline_mode<synchronous>, transform_indices = @transform_1, window_bounds = array<i64: 8, 2>}, {pipeline_mode = #tpu.pipeline_mode<synchronous>, transform_indices = @transform_2, window_bounds = array<i64: 2, 8>}, {transform_indices = @transform_3, window_bounds = array<i64: 1, 8, 256>}]} {
    %c0 = arith.constant 0 : index
    %c0_0 = arith.constant 0 : index
    %c0_1 = arith.constant 0 : index
    %0 = vector.load %arg1[%c0, %c0_0, %c0_1] : memref<1x8x256xf32, #tpu.memory_space<vmem>>, vector<1x8x256xf32>
    %cst = arith.constant dense<0.000000e+00> : vector<1x8xf32>
    %1 = vector.multi_reduction <add>, %0, %cst [2] : vector<1x8x256xf32> to vector<1x8xf32>
    %cst_2 = arith.constant 2.560000e+02 : f32
    %2 = vector.broadcast %cst_2 : f32 to vector<1x8xf32>
    %3 = arith.divf %1, %2 : vector<1x8xf32>
    %c0_3 = arith.constant 0 : index
    %c0_4 = arith.constant 0 : index
    %4 = vector.load %arg2[%c0_3, %c0_4] : memref<8x2xf32, #tpu.memory_space<vmem>>, vector<8x2xf32>
    %cst_5 = arith.constant dense<0.000000e+00> : vector<1x2xf32>
    %5 = tpu.matmul %3, %4, %cst_5 {dimension_numbers = #tpu.dot_dimension_numbers<[1], [0], [0], [1], [0, 0, 1, 1], [], []>} : vector<1x8xf32>, vector<8x2xf32>, vector<1x2xf32> -> vector<1x2xf32>
    %cst_6 = arith.constant 0.000000e+00 : f32
    %6 = vector.broadcast %cst_6 : f32 to vector<1x2xf32>
    %7 = arith.maximumf %5, %6 : vector<1x2xf32>
    %c0_7 = arith.constant 0 : index
    %c0_8 = arith.constant 0 : index
    %8 = vector.load %arg3[%c0_7, %c0_8] : memref<2x8xf32, #tpu.memory_space<vmem>>, vector<2x8xf32>
    %cst_9 = arith.constant dense<0.000000e+00> : vector<1x8xf32>
    %9 = tpu.matmul %7, %8, %cst_9 {dimension_numbers = #tpu.dot_dimension_numbers<[1], [0], [0], [1], [0, 0, 1, 1], [], []>} : vector<1x2xf32>, vector<2x8xf32>, vector<1x8xf32> -> vector<1x8xf32>
    %10 = arith.negf %9 : vector<1x8xf32>
    %11 = math.exp %10 : vector<1x8xf32>
    %cst_10 = arith.constant 1.000000e+00 : f32
    %12 = vector.broadcast %cst_10 : f32 to vector<1x8xf32>
    %13 = arith.addf %12, %11 : vector<1x8xf32>
    %14 = arith.divf %12, %13 : vector<1x8xf32>
    %15 = vector.shape_cast %14 : vector<1x8xf32> to vector<1x8x1xf32>
    %16 = vector.broadcast %15 : vector<1x8x1xf32> to vector<1x8x256xf32>
    %17 = arith.mulf %0, %16 : vector<1x8x256xf32>
    %c0_11 = arith.constant 0 : index
    %c0_12 = arith.constant 0 : index
    %c0_13 = arith.constant 0 : index
    %18 = vector.load %arg4[%c0_11, %c0_12, %c0_13] : memref<1x8x256xf32, #tpu.memory_space<vmem>>, vector<1x8x256xf32>
    tpu.vector_store %arg4[%c0_11, %c0_12, %c0_13], %17 {strides = array<i32>} : memref<1x8x256xf32, #tpu.memory_space<vmem>>, vector<1x8x256xf32>,
    return
  }
  func.func @transform_0(%arg0: i32) -> (i32, i32, i32) {
    %c0_i32 = arith.constant 0 : i32
    %c0_i32_0 = arith.constant 0 : i32
    %c0_i32_1 = arith.constant 0 : i32
    return %arg0, %c0_i32, %c0_i32_0 : i32, i32, i32
  }
  func.func @transform_1(%arg0: i32) -> (i32, i32) {
    %c0_i32 = arith.constant 0 : i32
    %c0_i32_0 = arith.constant 0 : i32
    %c0_i32_1 = arith.constant 0 : i32
    return %c0_i32, %c0_i32_0 : i32, i32
  }
  func.func @transform_2(%arg0: i32) -> (i32, i32) {
    %c0_i32 = arith.constant 0 : i32
    %c0_i32_0 = arith.constant 0 : i32
    %c0_i32_1 = arith.constant 0 : i32
    return %c0_i32, %c0_i32_0 : i32, i32
  }
  func.func @transform_3(%arg0: i32) -> (i32, i32, i32) {
    %c0_i32 = arith.constant 0 : i32
    %c0_i32_0 = arith.constant 0 : i32
    %c0_i32_1 = arith.constant 0 : i32
    return %arg0, %c0_i32, %c0_i32_0 : i32, i32, i32
  }
}

</mosaic_0001>

<llo_original>
// kernel: tpu_custom_call.1
$region0: #{tpu_custom_call.1}
  #allocation0 [shape = 'u32[]', space=smem, size = 0x4, offset = 0x4, fixed_abs, tag = 'smem constant byte address 0x4 - core index']
  #allocation1 [shape = 'u32[144,128]{1,0:T(1,128)}', space=vmem, size = 0x12000, scoped, tag = 'internal scratch']
  %s0 = inlined_call_operand.hbm [shape: f32[2,8,256], index: 0, kind: input, shape index: {}]
  %s1 = inlined_call_operand.vmem [shape: f32[8,2], index: 1, kind: input, shape index: {}]
  %s2 = inlined_call_operand.vmem [shape: f32[2,8], index: 2, kind: input, shape index: {}]
  %s3 = inlined_call_operand.hbm [shape: f32[2,8,256], index: 3, kind: output, shape index: {}]
  %s4 = sld [smem:[#allocation0]]
  $region49: #{tpu_custom_call.1} parent=0
    _
  %s6 = ssub.s32 1, %s4
  %s7 = scalar_select 0, %s6, %s4
  $region1: #{tpu_custom_call.1} parent=0
    #allocation2 [shape = 'u8[16384]{0}', space=vmem, size = 0x4000, scoped, tag = 'input window, operand 0']
    #allocation3 [shape = 's32[2]{0}', space=sflag, size = 0x8, scoped, tag = 'scoped memory for tpu_custom_call.1']
    #allocation4 [shape = 's32[2]{0}', space=sflag, size = 0x8, scoped, tag = 'scoped memory for tpu_custom_call.1']
    #allocation5 [shape = 'u8[16384]{0}', space=vmem, size = 0x4000, scoped, tag = 'output window, operand 0']
    %8 = vsyncpa [#allocation3], 0
    %s9 = scalar_lea.sflag [#allocation3], 1
    %10 = vsyncpa %s9, 0
    %11 = vsyncpa [#allocation4], 0
    %s12 = scalar_lea.sflag [#allocation4], 1
    %13 = vsyncpa %s12, 0
    loop: start=0, step=1, limit=4
    $region2: #{tpu_custom_call.1} parent=1 // loop_pre_header
      _
    $region3: #{tpu_custom_call.1} parent=1 // loop_header
      %s15 = sphi 0, %s19
      %p16 = scmp.ge.s32.totalorder %s15, 4
      %s25 = sphi 0, %s27
      %s28 = sphi 0, %s25
      %s29 = sphi 0, %s28
      %s45 = sphi 0, %s29
      %s49 = sphi 0, %s49
      %s51 = sphi 0, %s49
      %s52 = sphi 0, %s51
      %s66 = sphi 0, %s52
      %s70 = sphi 0, %s70
      %s72 = sphi 0, %s70
      %s73 = sphi 0, %s72
      %s87 = sphi 0, %s73
      %s93 = sphi 0, %s95
      %s96 = sphi 0, %s93
      %s97 = sphi 0, %s96
      %s113 = sphi 0, %s97
    $region4: #{tpu_custom_call.1} parent=1 // loop_header_branch
      %18 = sbr.rel (%p16) target = $region8
    $region5: #{tpu_custom_call.1} parent=1 // loop_body
      %s20 = ssub.s32 %s15, 1
      %s21 = ssub.s32 %s15, 2
      %s22 = sadd.s32 %s15, 1
      %s23 = ssub.s32 %s15, %s22
      %p24 = scmp.eq.s32.totalorder %s23, 0
      %s26 = sadd.s32 %s25, 1
      %s27 = scalar_select %p24, %s25, %s26
      %p30 = pneg %p24
      %p31 = scmp.eq.s32.totalorder %s15, 1
      %p32 = por %p30, %p31
      %p33 = scmp.ne.s32.totalorder %s25, %s28
      %p34 = scmp.eq.s32.totalorder %s15, 0
      %p35 = por %p33, %p34
      %p36 = scmp.ne.s32.totalorder %s25, %s28
      %p37 = scmp.eq.s32.totalorder %s20, 1
      %p38 = por %p36, %p37
      %p39 = scmp.ne.s32.totalorder %s28, %s29
      %p40 = scmp.eq.s32.totalorder %s20, 0
      %p41 = por %p39, %p40
      %p42 = scmp.ne.s32.totalorder %s28, %s29
      %p43 = scmp.eq.s32.totalorder %s21, 1
      %p44 = por %p42, %p43
      %p46 = scmp.ne.s32.totalorder %s29, %s45
      %p47 = scmp.eq.s32.totalorder %s21, 0
      %p48 = por %p46, %p47
      %s50 = sadd.s32 %s49, 1
      %p53 = scmp.eq.s32.totalorder %s15, 1
      %p54 = scmp.ne.s32.totalorder %s49, %s51
      %p55 = scmp.eq.s32.totalorder %s15, 0
      %p56 = por %p54, %p55
      %p57 = scmp.ne.s32.totalorder %s49, %s51
      %p58 = scmp.eq.s32.totalorder %s20, 1
      %p59 = por %p57, %p58
      %p60 = scmp.ne.s32.totalorder %s51, %s52
      %p61 = scmp.eq.s32.totalorder %s20, 0
      %p62 = por %p60, %p61
      %p63 = scmp.ne.s32.totalorder %s51, %s52
      %p64 = scmp.eq.s32.totalorder %s21, 1
      %p65 = por %p63, %p64
      %p67 = scmp.ne.s32.totalorder %s52, %s66
      %p68 = scmp.eq.s32.totalorder %s21, 0
      %p69 = por %p67, %p68
      %s71 = sadd.s32 %s70, 1
      %p74 = scmp.eq.s32.totalorder %s15, 1
      %p75 = scmp.ne.s32.totalorder %s70, %s72
      %p76 = scmp.eq.s32.totalorder %s15, 0
      %p77 = por %p75, %p76
      %p78 = scmp.ne.s32.totalorder %s70, %s72
      %p79 = scmp.eq.s32.totalorder %s20, 1
      %p80 = por %p78, %p79
      %p81 = scmp.ne.s32.totalorder %s72, %s73
      %p82 = scmp.eq.s32.totalorder %s20, 0
      %p83 = por %p81, %p82
      %p84 = scmp.ne.s32.totalorder %s72, %s73
      %p85 = scmp.eq.s32.totalorder %s21, 1
      %p86 = por %p84, %p85
      %p88 = scmp.ne.s32.totalorder %s73, %s87
      %p89 = scmp.eq.s32.totalorder %s21, 0
      %p90 = por %p88, %p89
      %s91 = ssub.s32 %s15, %s22
      %p92 = scmp.eq.s32.totalorder %s91, 0
      %s94 = sadd.s32 %s93, 1
      %s95 = scalar_select %p92, %s93, %s94
      %p98 = pneg %p92
      %p99 = scmp.eq.s32.totalorder %s15, 1
      %p100 = por %p98, %p99
      %p101 = scmp.ne.s32.totalorder %s93, %s96
      %p102 = scmp.eq.s32.totalorder %s15, 0
      %p103 = por %p101, %p102
      %p104 = scmp.ne.s32.totalorder %s93, %s96
      %p105 = scmp.eq.s32.totalorder %s20, 1
      %p106 = por %p104, %p105
      %p107 = scmp.ne.s32.totalorder %s96, %s97
      %p108 = scmp.eq.s32.totalorder %s20, 0
      %p109 = por %p107, %p108
      %p110 = scmp.ne.s32.totalorder %s96, %s97
      %p111 = scmp.eq.s32.totalorder %s21, 1
      %p112 = por %p110, %p111
      %p114 = scmp.ne.s32.totalorder %s97, %s113
      %p115 = scmp.eq.s32.totalorder %s21, 0
      %p116 = por %p114, %p115
      %p117 = scmp.le.s32.totalorder 1, %s15
      %p118 = scmp.lt.s32.totalorder %s15, 3
      %p119 = pnand %p117, %p118
      %p120 = pneg %p119
      // Predicated region
      $region9: #{tpu_custom_call.1} parent=5 // pred_check
        _
      $region10: #{tpu_custom_call.1} parent=5 // pred_check_branch
        %122 = sbr.rel (%p119) target = $region12
      $region11: #{tpu_custom_call.1} parent=5 // pred_region
        %s123 = ssub.s32 %s15, 1
        // Predicated region
        $region13: #{tpu_custom_call.1} parent=11 // pred_check
          %p124 = pneg %p62
        $region14: #{tpu_custom_call.1} parent=11 // pred_check_branch
          %126 = sbr.rel (%p124) target = $region16
        $region15: #{tpu_custom_call.1} parent=11 // pred_region
          _
        $region16: #{tpu_custom_call.1} parent=11 // pred_fallthru
          _
        // Predicated region
        $region17: #{tpu_custom_call.1} parent=11 // pred_check
          %p127 = pneg %p83
        $region18: #{tpu_custom_call.1} parent=11 // pred_check_branch
          %129 = sbr.rel (%p127) target = $region20
        $region19: #{tpu_custom_call.1} parent=11 // pred_region
          _
        $region20: #{tpu_custom_call.1} parent=11 // pred_fallthru
          _
      $region12: #{tpu_custom_call.1} parent=5 // pred_fallthru
        _
      %p130 = scmp.lt.s32.totalorder %s15, 2
      // Predicated region
      $region21: #{tpu_custom_call.1} parent=5 // pred_check
        %p131 = pneg %p130
      $region22: #{tpu_custom_call.1} parent=5 // pred_check_branch
        %133 = sbr.rel (%p131) target = $region24
      $region23: #{tpu_custom_call.1} parent=5 // pred_region
        // Predicated region
        $region25: #{tpu_custom_call.1} parent=23 // pred_check
          %p134 = pneg %p35
        $region26: #{tpu_custom_call.1} parent=23 // pred_check_branch
          %136 = sbr.rel (%p134) target = $region28
        $region27: #{tpu_custom_call.1} parent=23 // pred_region
          %s137 = sand.u32 %s25, 1
          %s138 = scalar_lea.sflag [#allocation3], %s137
          %s139 = sand.u32 %s25, 1
          %s140 = smul.addr %s139, 16
          %s141 = scalar_lea.vmem [#allocation2], %s140
          %s143 = ssub.s32 256, 256
          %144 = vsyncadd %s138, %s143
          %s145 = smul.addr %s15, 2
          %s146 = smul.addr %s145, 128
          %s147 = scalar_lea.hbm %s0, %s146
          %s149 = sshll.u32 %s141, 4
          %s150 = int_to_ptr.vmem [resolvable:$true] %s149
          %152 = dma.hbm_to_vmem [thread:$0]  %s147, 256, %s150, %s138
        $region28: #{tpu_custom_call.1} parent=23 // pred_fallthru
          _
      $region24: #{tpu_custom_call.1} parent=5 // pred_fallthru
        _
      %p153 = scmp.le.s32.totalorder 1, %s15
      %p154 = scmp.lt.s32.totalorder %s15, 3
      %p155 = pnand %p153, %p154
      %p156 = pneg %p155
      // Predicated region
      $region29: #{tpu_custom_call.1} parent=5 // pred_check
        _
      $region30: #{tpu_custom_call.1} parent=5 // pred_check_branch
        %158 = sbr.rel (%p155) target = $region32
      $region31: #{tpu_custom_call.1} parent=5 // pred_region
        %s159 = ssub.s32 %s15, 1
        %s160 = sand.u32 %s28, 1
        %s161 = scalar_lea.sflag [#allocation3], %s160
        %s162 = sand.u32 %s28, 1
        %s163 = smul.addr %s162, 16
        %s164 = scalar_lea.vmem [#allocation2], %s163
        // Predicated region
        $region33: #{tpu_custom_call.1} parent=31 // pred_check
          %p165 = pneg %p41
        $region34: #{tpu_custom_call.1} parent=31 // pred_check_branch
          %167 = sbr.rel (%p165) target = $region36
        $region35: #{tpu_custom_call.1} parent=31 // pred_region
          %168 = dma.done %s161, 256
        $region36: #{tpu_custom_call.1} parent=31 // pred_fallthru
          _
        %s169 = sand.u32 %s28, 1
        %s170 = scalar_lea.sflag [#allocation3], %s169
        %s171 = sand.u32 %s28, 1
        %s172 = smul.addr %s171, 16
        %s173 = scalar_lea.vmem [#allocation2], %s172
        %p174 = pneg %p41
        %p175 = pneg %p38
        %p176 = pneg %p62
        %p177 = pneg %p59
        %p178 = pneg %p83
        %p179 = pneg %p80
        %p180 = pneg %p109
        %p181 = pneg %p106
        %s182 = sand.u32 %s96, 1
        %s183 = scalar_lea.sflag [#allocation4], %s182
        %s184 = sand.u32 %s96, 1
        %s185 = smul.addr %s184, 16
        %s186 = scalar_lea.vmem [#allocation5], %s185
        %v187 = vld [vmem:[%s164] sm:$0xff]
        %v188 = vld [vmem:[%s164 + $0x8] sm:$0xff]
        %v189 = vadd.f32 %v187, %v188
        %190 = vadd.xlane.f32.xlu0 %v189
        %v191 = vpop.xlane.xlu0 %190
        %v192 = vrcp.pop 256.0
        %v193 = vmul.f32 %v191, %v192
        %v194 = vld [vmem:[%s1] sm:$0xff]
        %v196 = vlaneseq
        %v197 = vand.u32 %v196, 127
        %v198 = vlaneseq
        %v199 = vshrl.u32 %v198, 7
        %v200 = vsub.s32 %v197, %v199
        %v201 = vrot.slane %v193, %v200
        %vm202 = vcmask 64512
        %v203 = vsel %vm202, %v201, 0
        %205 = vmatprep.subr.mxu0 0.0
        %206 = vmatpush1.msra.mxu0 %v194
        %207 = vmatprep.subr.mxu0 0.0
        %208 = vmatpush1.msra.mxu0 0.0
        %209 = vmatprep.subr.mxu0 0.0
        %210 = vmatpush1.msra.mxu0 0.0
        %211 = vmatprep.subr.mxu0 0.0
        %212 = vmatpush1.msra.mxu0 0.0
        %213 = vmatprep.subr.mxu0 0.0
        %214 = vmatpush1.msra.mxu0 0.0
        %215 = vmatprep.subr.mxu0 0.0
        %216 = vmatpush1.msra.mxu0 0.0
        %217 = vmatprep.subr.mxu0 0.0
        %218 = vmatpush1.msra.mxu0 0.0
        %219 = vmatprep.subr.mxu0 0.0
        %220 = vmatpush1.msra.mxu0 0.0
        %221 = vmatprep.subr.mxu0 0.0
        %222 = vmatpush1.msra.mxu0 0.0
        %223 = vmatprep.subr.mxu0 0.0
        %224 = vmatpush1.msra.mxu0 0.0
        %225 = vmatprep.subr.mxu0 0.0
        %226 = vmatpush1.msra.mxu0 0.0
        %227 = vmatprep.subr.mxu0 0.0
        %228 = vmatpush1.msra.mxu0 0.0
        %229 = vmatprep.subr.mxu0 0.0
        %230 = vmatpush1.msra.mxu0 0.0
        %231 = vmatprep.subr.mxu0 0.0
        %232 = vmatpush1.msra.mxu0 0.0
        %233 = vmatprep.subr.mxu0 0.0
        %234 = vmatpush1.msra.mxu0 0.0
        %235 = vmatprep.subr.mxu0 0.0
        %236 = vmatpush1.msra.mxu0 0.0
        %237 = vmatprep.subr.mxu0 0.0
        %238 = vmatpush1.msra.mxu0 0.0
        %239 = vmatprep.subr.mxu0 0.0
        %240 = vmatpush1.msra.mxu0 0.0
        %241 = vmatprep.subr.mxu0 0.0
        %242 = vmatpush1.msra.mxu0 0.0
        %243 = vmatprep.subr.mxu0 0.0
        %244 = vmatpush1.msra.mxu0 0.0
        %245 = vmatprep.subr.mxu0 0.0
        %246 = vmatpush1.msra.mxu0 0.0
        %247 = vmatprep.subr.mxu0 0.0
        %248 = vmatpush1.msra.mxu0 0.0
        %249 = vmatprep.subr.mxu0 0.0
        %250 = vmatpush1.msra.mxu0 0.0
        %251 = vmatprep.subr.mxu0 0.0
        %252 = vmatpush1.msra.mxu0 0.0
        %253 = vmatprep.subr.mxu0 0.0
        %254 = vmatpush1.msra.mxu0 0.0
        %255 = vmatprep.subr.mxu0 0.0
        %256 = vmatpush1.msra.mxu0 0.0
        %257 = vmatprep.subr.mxu0 0.0
        %258 = vmatpush1.msra.mxu0 0.0
        %259 = vmatprep.subr.mxu0 0.0
        %260 = vmatpush1.msra.mxu0 0.0
        %261 = vmatprep.subr.mxu0 0.0
        %262 = vmatpush1.msra.mxu0 0.0
        %263 = vmatprep.subr.mxu0 0.0
        %264 = vmatpush1.msra.mxu0 0.0
        %265 = vmatprep.subr.mxu0 0.0
        %266 = vmatpush1.msra.mxu0 0.0
        %267 = vmatprep.subr.mxu0 0.0
        %268 = vmatpush1.msra.mxu0 0.0
        %269 = vmatprep.mubr.f32.mxu0 0.0
        %270 = vmatmul.mubr.f32.gmra.mrb[0].mxu0 %v203
        %v271 = vpop.f32.mrb[0].mxu0
        %v272 = vadd.f32 0.0, %v271
        %v273 = vpop.f32.mrb[0].mxu0
        %274 = vdwg.mxu0
        %v275 = vmax.f32 %v272, 0.0
        %v276 = vld [vmem:[%s2] sm:$0x3]
        %vm277 = vcmask 15360
        %v279 = vsel %vm277, %v275, 0
        %vm281 = vcmask 1041408
        %v283 = vsel %vm281, %v276, 0
        %285 = vmatprep.subr.mxu0 0.0
        %286 = vmatpush1.msra.mxu0 %v283
        %287 = vmatprep.subr.mxu0 0.0
        %288 = vmatpush1.msra.mxu0 0.0
        %289 = vmatprep.subr.mxu0 0.0
        %290 = vmatpush1.msra.mxu0 0.0
        %291 = vmatprep.subr.mxu0 0.0
        %292 = vmatpush1.msra.mxu0 0.0
        %293 = vmatprep.subr.mxu0 0.0
        %294 = vmatpush1.msra.mxu0 0.0
        %295 = vmatprep.subr.mxu0 0.0
        %296 = vmatpush1.msra.mxu0 0.0
        %297 = vmatprep.subr.mxu0 0.0
        %298 = vmatpush1.msra.mxu0 0.0
        %299 = vmatprep.subr.mxu0 0.0
        %300 = vmatpush1.msra.mxu0 0.0
        %301 = vmatprep.subr.mxu0 0.0
        %302 = vmatpush1.msra.mxu0 0.0
        %303 = vmatprep.subr.mxu0 0.0
        %304 = vmatpush1.msra.mxu0 0.0
        %305 = vmatprep.subr.mxu0 0.0
        %306 = vmatpush1.msra.mxu0 0.0
        %307 = vmatprep.subr.mxu0 0.0
        %308 = vmatpush1.msra.mxu0 0.0
        %309 = vmatprep.subr.mxu0 0.0
        %310 = vmatpush1.msra.mxu0 0.0
        %311 = vmatprep.subr.mxu0 0.0
        %312 = vmatpush1.msra.mxu0 0.0
        %313 = vmatprep.subr.mxu0 0.0
        %314 = vmatpush1.msra.mxu0 0.0
        %315 = vmatprep.subr.mxu0 0.0
        %316 = vmatpush1.msra.mxu0 0.0
        %317 = vmatprep.subr.mxu0 0.0
        %318 = vmatpush1.msra.mxu0 0.0
        %319 = vmatprep.subr.mxu0 0.0
        %320 = vmatpush1.msra.mxu0 0.0
        %321 = vmatprep.subr.mxu0 0.0
        %322 = vmatpush1.msra.mxu0 0.0
        %323 = vmatprep.subr.mxu0 0.0
        %324 = vmatpush1.msra.mxu0 0.0
        %325 = vmatprep.subr.mxu0 0.0
        %326 = vmatpush1.msra.mxu0 0.0
        %327 = vmatprep.subr.mxu0 0.0
        %328 = vmatpush1.msra.mxu0 0.0
        %329 = vmatprep.subr.mxu0 0.0
        %330 = vmatpush1.msra.mxu0 0.0
        %331 = vmatprep.subr.mxu0 0.0
        %332 = vmatpush1.msra.mxu0 0.0
        %333 = vmatprep.subr.mxu0 0.0
        %334 = vmatpush1.msra.mxu0 0.0
        %335 = vmatprep.subr.mxu0 0.0
        %336 = vmatpush1.msra.mxu0 0.0
        %337 = vmatprep.subr.mxu0 0.0
        %338 = vmatpush1.msra.mxu0 0.0
        %339 = vmatprep.subr.mxu0 0.0
        %340 = vmatpush1.msra.mxu0 0.0
        %341 = vmatprep.subr.mxu0 0.0
        %342 = vmatpush1.msra.mxu0 0.0
        %343 = vmatprep.subr.mxu0 0.0
        %344 = vmatpush1.msra.mxu0 0.0
        %345 = vmatprep.subr.mxu0 0.0
        %346 = vmatpush1.msra.mxu0 0.0
        %347 = vmatprep.subr.mxu0 0.0
        %348 = vmatpush1.msra.mxu0 0.0
        %349 = vmatprep.mubr.f32.mxu0 0.0
        %350 = vmatmul.mubr.f32.gmra.mrb[0].mxu0 %v279
        %v351 = vpop.f32.mrb[0].mxu0
        %v352 = vadd.f32 0.0, %v351
        %v353 = vpop.f32.mrb[0].mxu0
        %354 = vdwg.mxu0
        %v355 = vxor.u32 %v352, 2147483648
        %v356 = vmul.f32 %v355, 1.442695
        %v357 = vpow.pop %v356
        %v358 = vadd.f32 %v357, 1.0
        %v359 = vrcp.pop %v358
        %v360 = vmul.f32 1.0, %v359
        %v361 = vlaneseq
        %v362 = vshrl.u32 %v361, 7
        %v363 = vsub.s32 0, %v362
        %v364 = vrot.slane %v360, %v363
        %366 = vbcast.lane.b32.xlu0 %v364, 256
        %v367 = vpop.permute.xlu0 %366
        %v368 = vmul.f32 %v187, %v367
        %v369 = vmul.f32 %v188, %v367
        %370 = vst [vmem:[%s186] sm:$0xff] %v368
        %371 = vst [vmem:[%s186 + $0x8] sm:$0xff] %v369
        %s372 = sand.u32 %s96, 1
        %s373 = scalar_lea.sflag [#allocation4], %s372
        %s374 = sand.u32 %s96, 1
        %s375 = smul.addr %s374, 16
        %s376 = scalar_lea.vmem [#allocation5], %s375
        // Predicated region
        $region37: #{tpu_custom_call.1} parent=31 // pred_check
          %p377 = pneg %p106
        $region38: #{tpu_custom_call.1} parent=31 // pred_check_branch
          %379 = sbr.rel (%p377) target = $region40
        $region39: #{tpu_custom_call.1} parent=31 // pred_region
          %s381 = ssub.s32 256, 256
          %382 = vsyncadd %s373, %s381
          %s383 = smul.addr %s20, 2
          %s384 = smul.addr %s383, 128
          %s385 = scalar_lea.hbm %s3, %s384
          %s387 = sshll.u32 %s376, 4
          %s388 = int_to_ptr.vmem [resolvable:$true] %s387
          %390 = dma.vmem_to_hbm [thread:$0]  %s388, 256, %s385, %s373
        $region40: #{tpu_custom_call.1} parent=31 // pred_fallthru
          _
      $region32: #{tpu_custom_call.1} parent=5 // pred_fallthru
        _
      %p391 = scmp.le.s32.totalorder 2, %s15
      // Predicated region
      $region41: #{tpu_custom_call.1} parent=5 // pred_check
        %p392 = pneg %p391
      $region42: #{tpu_custom_call.1} parent=5 // pred_check_branch
        %394 = sbr.rel (%p392) target = $region44
      $region43: #{tpu_custom_call.1} parent=5 // pred_region
        %s395 = ssub.s32 %s15, 2
        // Predicated region
        $region45: #{tpu_custom_call.1} parent=43 // pred_check
          %p396 = pneg %p112
        $region46: #{tpu_custom_call.1} parent=43 // pred_check_branch
          %398 = sbr.rel (%p396) target = $region48
        $region47: #{tpu_custom_call.1} parent=43 // pred_region
          %s399 = sand.u32 %s97, 1
          %s400 = scalar_lea.sflag [#allocation4], %s399
          %s401 = sand.u32 %s97, 1
          %s402 = smul.addr %s401, 16
          %s403 = scalar_lea.vmem [#allocation5], %s402
          %404 = dma.done %s400, 256
        $region48: #{tpu_custom_call.1} parent=43 // pred_fallthru
          _
      $region44: #{tpu_custom_call.1} parent=5 // pred_fallthru
        _
    $region6: #{tpu_custom_call.1} parent=1 // loop_footer
      %s19 = sadd.s32 1, %s15
    $region7: #{tpu_custom_call.1} parent=1 // loop_footer_branch
      %14 = sbr.rel target = $region3
    $region8: #{tpu_custom_call.1} parent=1 // loop_exit
      _
    %405 = vsyncpa [#allocation3], 1
    %s406 = scalar_lea.sflag [#allocation3], 1
    %407 = vsyncpa %s406, 1
    %408 = vsyncpa [#allocation4], 1
    %s409 = scalar_lea.sflag [#allocation4], 1
    %410 = vsyncpa %s409, 1

</llo_original>
